<compile_context>
chip_gen: v5e
topology: v5e:2x2
jax: 0.10.0
libtpu: 0.0.40
codegen_flags: <defaults>
</compile_context>

<pallas_src>
import jax
import jax.numpy as jnp
from jax import lax
from jax.experimental import pallas as pl
from jax.experimental.pallas import tpu as pltpu


def _round_up(a, b):
    return pl.cdiv(a, b) * b


def _pick_rows_tile(n, cap):
    """Largest row tile (multiple of 8, <= cap); if the resulting 1-D grid would
    have a single step, split it so v7x's two TensorCores both get work."""
    cap = max(8, (int(cap) // 8) * 8)
    t = min(cap, _round_up(n, 8))
    if _round_up(n, t) // t < 2 and n >= 16:
        t = min(t, _round_up(pl.cdiv(n, 2), 8))
    return t


# ----------------------------------------------------------------------------
# Kernel 1 (fused): tiled pairwise squared distances + streaming top-k indices
# ----------------------------------------------------------------------------
def _make_knn_kernel(n_valid, k, t):
    def kernel(xr_ref, xc_ref, idx_ref, cd_ref, ci_ref):
        j = pl.program_id(1)

        # carry slots (last k lanes of the candidate scratch) hold the running
        # best-k (distance, index) of this row tile across column tiles.
        @pl.when(j == 0)
        def _():
            cd_ref[:, t:] = jnp.full((t, k), jnp.inf, jnp.float32)
            ci_ref[:, t:] = jnp.full((t, k), -1.0, jnp.float32)

        xr = xr_ref[...]                                   # [t, C]
        xc = xc_ref[...]                                   # [t, C]
        # 'nc,mc->nm': contract last dims, no transpose relayout; ranking in f32.
        gram = lax.dot_general(xr, xc, (((1,), (1,)), ((), ())),
                               preferred_element_type=jnp.float32)
        sq_r = jnp.sum(xr * xr, axis=1, keepdims=True)     # [t, 1]
        sq_c = jnp.sum(xc * xc, axis=1, keepdims=True)     # [t, 1]
        d = sq_r + sq_c.T - 2.0 * gram                     # [t, t]

        col = j * t + lax.broadcasted_iota(jnp.int32, (t, t), 1)
        d = jnp.where(col < n_valid, d, jnp.inf)           # mask padded columns
        cd_ref[:, :t] = d
        ci_ref[:, :t] = col.astype(jnp.float32)            # indices exact in f32

        cand_d = cd_ref[...]                               # [t, t + k]
        cand_i = ci_ref[...]
        big = jnp.float32(3.0e38)
        for m in range(k):   # unrolled streaming k-selection (ties -> lowest idx)
            mn = jnp.min(cand_d, axis=1, keepdims=True)                     # [t, 1]
            hit = cand_d == mn
            si = jnp.min(jnp.where(hit, cand_i, big), axis=1, keepdims=True)
            cd_ref[:, t + m:t + m + 1] = mn
            ci_ref[:, t + m:t + m + 1] = si
            cand_d = jnp.where(hit & (cand_i == si), jnp.inf, cand_d)

        @pl.when(j == pl.num_programs(1) - 1)
        def _():
            idx_ref[...] = ci_ref[:, t:].astype(jnp.int32)

    return kernel


def knn_indices(x, k, *, vmem_budget=24 * 1024 * 1024):
    """k nearest neighbours of every row of x (self included), [N, k] int32."""
    n, c = x.shape
    assert k <= n, "k must be <= number of points"
    x = x.astype(jnp.float32)
    cap = 512
    while cap > 8 and (6 * cap * cap + 4 * cap * c) * 4 > vmem_budget:
        cap //= 2
    t = _pick_rows_tile(n, cap)
    t = max(t, _round_up(k, 8))            # first tile must hold >= k valid cols
    n_pad = _round_up(n, t)
    xp = x if n_pad == n else jnp.pad(x, ((0, n_pad - n), (0, 0)))
    nt = n_pad // t
    idx = pl.pallas_call(
        _make_knn_kernel(n, k, t),
        out_shape=jax.ShapeDtypeStruct((n_pad, k), jnp.int32),
        grid=(nt, nt),
        in_specs=[
            pl.BlockSpec((t, c), lambda i, j: (i, 0)),
            pl.BlockSpec((t, c), lambda i, j: (j, 0)),
        ],
        out_specs=pl.BlockSpec((t, k), lambda i, j: (i, 0)),
        scratch_shapes=[pltpu.VMEM((t, t + k), jnp.float32),
                        pltpu.VMEM((t, t + k), jnp.float32)],
        compiler_params=pltpu.CompilerParams(
            dimension_semantics=("parallel", "arbitrary"),
            vmem_limit_bytes=32 * 1024 * 1024),
    )(xp, xp)
    return idx if n_pad == n else idx[:n]


# ----------------------------------------------------------------------------
# Kernel 2: per-node "neighbour" projection  Q = x @ (Wb * bn_scale)
# ----------------------------------------------------------------------------
def _proj_kernel(x_ref, w_ref, o_ref):
    o_ref[...] = jnp.dot(x_ref[...].astype(w_ref.dtype), w_ref[...],
                         preferred_element_type=jnp.float32)


def project_nodes(x, w, *, vmem_budget=24 * 1024 * 1024):
    n, c = x.shape
    h = w.shape[1]
    per_row = 2 * 4 * (c + h)                        # double-buffered x + out
    fixed = 2 * w.dtype.itemsize * c * h             # (double-buffered) weight
    cap = max(8, (vmem_budget - fixed) // max(per_row, 1))
    tn = _pick_rows_tile(n, min(cap, 1024))
    n_pad = _round_up(n, tn)
    xp = x if n_pad == n else jnp.pad(x, ((0, n_pad - n), (0, 0)))
    out = pl.pallas_call(
        _proj_kernel,
        out_shape=jax.ShapeDtypeStruct((n_pad, h), jnp.float32),
        grid=(n_pad // tn,),
        in_specs=[
            pl.BlockSpec((tn, c), lambda i: (i, 0)),
            pl.BlockSpec((c, h), lambda i: (0, 0)),
        ],
        out_specs=pl.BlockSpec((tn, h), lambda i: (i, 0)),
        compiler_params=pltpu.CompilerParams(
            dimension_semantics=("parallel",),
            vmem_limit_bytes=32 * 1024 * 1024),
    )(xp, w)
    return out if n_pad == n else out[:n]


# ----------------------------------------------------------------------------
# Kernel 3 (fused): layer-1 self term + LeakyReLU + layer-2 + k-max
#                   + PointShuffle + final Linear  (lane-dense padded output)
# ----------------------------------------------------------------------------
def _edge_fused_kernel(x_ref, qg_ref, wp_ref, shift_ref, w2_ref, b2_ref,
                       wl_ref, bl_ref, out_ref):
    tn, k, h = qg_ref.shape
    cr = w2_ref.shape[1]

    # layer 1 (Linear + folded eval-BatchNorm): pre[n,j] = x[n]@Wp + Q[idx[n,j]] + shift
    p = jnp.dot(x_ref[...].astype(wp_ref.dtype), wp_ref[...],
                preferred_element_type=jnp.float32)               # [tn, h]
    pre = p[:, None, :] + qg_ref[...] + shift_ref[...][None, :, :]
    act = jnp.where(pre > 0, pre, 0.2 * pre)                      # LeakyReLU(0.2), f32

    # layer 2: one flat MXU matmul over all tn*k edges of the tile.
    e = jnp.dot(act.reshape(tn * k, h).astype(w2_ref.dtype), w2_ref[...],
                preferred_element_type=jnp.float32)               # [tn*k, cr]
    y = jnp.max(e.reshape(tn, k, cr), axis=1) + b2_ref[...]       # max over nbrs

    # PointShuffle (columns pre-permuted) + final Linear folded into a
    # lane-padded block-diagonal kron(I_r, wl): one matmul, unmasked stores.
    out_ref[...] = jnp.dot(y.astype(wl_ref.dtype), wl_ref[...],
                           preferred_element_type=jnp.float32) + bl_ref[...]


def edge_conv_shuffle_linear(x, qg, wp, shift, w2p, b2p, wl_big, bl_big,
                             *, vmem_budget=24 * 1024 * 1024):
    n, c = x.shape
    k, h = qg.shape[1], qg.shape[2]
    cr = w2p.shape[1]
    out_w = wl_big.shape[1]                     # lane-padded r * out_channels
    wb = wp.dtype.itemsize
    # per-row VMEM: double-buffered x/qg/out streams + single [k,h]/[k,cr] f32
    # intermediates;  fixed: (double-buffered) weights + biases.
    per_row = 2 * 4 * (c + k * h + out_w) + 4 * (k * h + k * cr + h + cr)
    fixed = 2 * wb * (c * h + h * cr + cr * out_w) + 2 * 4 * (h + cr + out_w)
    cap = max(8, (vmem_budget - fixed) // max(per_row, 1))
    tn = _pick_rows_tile(n, min(cap, 1024))
    n_pad = _round_up(n, tn)
    if n_pad != n:
        x = jnp.pad(x, ((0, n_pad - n), (0, 0)))
        qg = jnp.pad(qg, ((0, n_pad - n), (0, 0), (0, 0)))
    out = pl.pallas_call(
        _edge_fused_kernel,
        out_shape=jax.ShapeDtypeStruct((n_pad, out_w), jnp.float32),
        grid=(n_pad // tn,),
        in_specs=[
            pl.BlockSpec((tn, c), lambda i: (i, 0)),
            pl.BlockSpec((tn, k, h), lambda i: (i, 0, 0)),
            pl.BlockSpec((c, h), lambda i: (0, 0)),
            pl.BlockSpec((1, h), lambda i: (0, 0)),
            pl.BlockSpec((h, cr), lambda i: (0, 0)),
            pl.BlockSpec((1, cr), lambda i: (0, 0)),
            pl.BlockSpec((cr, out_w), lambda i: (0, 0)),
            pl.BlockSpec((1, out_w), lambda i: (0, 0)),
        ],
        out_specs=pl.BlockSpec((tn, out_w), lambda i: (i, 0)),
        compiler_params=pltpu.CompilerParams(
            dimension_semantics=("parallel",),
            vmem_limit_bytes=32 * 1024 * 1024),
    )(x, qg, wp, shift, w2p, b2p, wl_big, bl_big)
    return out if n_pad == n else out[:n]


# ----------------------------------------------------------------------------
# Parameter folding (done once, outside the kernels)
# ----------------------------------------------------------------------------
def fold_params(params, *, in_channels, r, matmul_dtype=jnp.float32):
    c = in_channels
    w1, b1 = params["w1"], params["b1"]
    s, t = params["bn_scale"], params["bn_shift"]
    w2, b2 = params["w2"], params["b2"]
    wl, bl = params["wl"], params["bl"]
    h = w1.shape[1]
    cr = w2.shape[1]
    out_c = wl.shape[1]

    # split layer 1 over [x_i, x_j - x_i] and fold eval-mode BatchNorm:
    #   lin1(ef) = x_i @ (Wa - Wb) + x_j @ Wb + b1
    wa, wb = w1[:c], w1[c:]
    wp = (wa - wb) * s                                            # [C, h] self
    wq = wb * s                                                   # [C, h] neighbour
    shift = b1 * s + t                                            # [1, h]

    # permute layer-2 output columns  c2*r + ro -> ro*C + c2  so PointShuffle is
    # a no-op on the kernel's [tn, cr] tile.
    w2p = w2.reshape(h, c, r).transpose(0, 2, 1).reshape(h, cr)
    b2p = b2.reshape(1, c, r).transpose(0, 2, 1).reshape(1, cr)

    # fold PointShuffle + final Linear into a block-diagonal kron(I_r, wl);
    # zero-pad columns up to a multiple of 128 lanes for unmasked stores.
    out_w = r * out_c
    out_w_pad = _round_up(out_w, 128)
    wl_big = jnp.kron(jnp.eye(r, dtype=wl.dtype), wl)             # [cr, out_w]
    bl_big = jnp.tile(bl, (1, r))                                 # [1, out_w]
    if out_w_pad != out_w:
        wl_big = jnp.pad(wl_big, ((0, 0), (0, out_w_pad - out_w)))
        bl_big = jnp.pad(bl_big, ((0, 0), (0, out_w_pad - out_w)))

    return dict(
        wp=wp.astype(matmul_dtype), wq=wq.astype(matmul_dtype),
        shift=shift.astype(jnp.float32),
        w2p=w2p.astype(matmul_dtype), b2p=b2p.astype(jnp.float32),
        wl_big=wl_big.astype(matmul_dtype), bl_big=bl_big.astype(jnp.float32),
        hidden=h, out_channels=out_c, out_w=out_w,
    )


# ----------------------------------------------------------------------------
# NodeShuffle forward (batch=None path)
# ----------------------------------------------------------------------------
def node_shuffle_forward(x, params, *, k, r, matmul_dtype=None):
    n, c = x.shape
    if matmul_dtype is None:
        # bf16 MXU path only pays off when the edge-MLP matmuls dominate
        # (large C); keep f32 at small C to match the f32 reference tightly.
        matmul_dtype = jnp.bfloat16 if c >= 64 else jnp.float32
    fp = fold_params(params, in_channels=c, r=r, matmul_dtype=matmul_dtype)

    # 1) dynamic kNN graph: fused distances + streaming top-k (only [N, k]
    #    int32 ever reaches HBM; no [N, N] matrix, no XLA sort).
    idx = knn_indices(x, k)                                       # [N, k]

    # pad the neighbour axis to a multiple of 8 (layout-free reshapes in the
    # fused kernel); duplicated neighbours are exact under max-aggregation.
    k_pad = _round_up(k, 8)
    if k_pad != k:
        idx = jnp.concatenate(
            [idx, jnp.broadcast_to(idx[:, :1], (n, k_pad - k))], axis=1)

    # 2) per-node layer-1 neighbour projection Q = x @ (Wb * bn_scale)
    q = project_nodes(x, fp["wq"])                                # [N, h]
    # TODO(synk): the row gather Q[idx] has no clean single-BlockSpec Pallas
    # expression; it stays as XLA glue (an in-kernel DMA gather needs per-row
    # descriptors and only pays off for large h).
    qg = jnp.take(q, idx, axis=0)                                 # [N, k_pad, h]

    # 3) fused: layer-1 self term + LeakyReLU + layer-2 + k-max + PointShuffle
    #    + final Linear (lane-dense padded output).
    out = edge_conv_shuffle_linear(x, qg, fp["wp"], fp["shift"], fp["w2p"],
                                   fp["b2p"], fp["wl_big"], fp["bl_big"])
    out = out[:, :fp["out_w"]]                                    # drop lane pad
    return out.reshape(n * r, fp["out_channels"])                 # [N*r, out_c]


# ----------------------------------------------------------------------------
# Pure-JAX reference (matches the PyTorch module in eval mode)
# ----------------------------------------------------------------------------
def node_shuffle_reference(x, params, *, k, r):
    n, c = x.shape
    sq = jnp.sum(x * x, axis=1, keepdims=True)
    d = sq + sq.T - 2.0 * (x @ x.T)
    _, idx = jax.lax.top_k(-d, k)
    xj = jnp.take(x, idx, axis=0)
    xi = jnp.broadcast_to(x[:, None, :], (n, k, c))
    ef = jnp.concatenate([xi, xj - xi], axis=-1)
    h = ef @ params["w1"] + params["b1"]
    h = h * params["bn_scale"] + params["bn_shift"]
    h = jnp.where(h > 0, h, 0.2 * h)
    e = h @ params["w2"] + params["b2"]
    y = jnp.max(e, axis=1)
    y = jnp.transpose(y.reshape(n, c, r), (0, 2, 1)).reshape(n * r, c)
    return y @ params["wl"] + params["bl"]


# ----------------------------------------------------------------------------
# Deterministic parameter construction (mirrors module __init__ shapes)
# ----------------------------------------------------------------------------
def make_params(key, in_channels, out_channels, r):
    c = in_channels
    cr = c * r
    h = cr // 2
    ks = jax.random.split(key, 7)
    w1 = 0.1 * jax.random.normal(ks[0], (2 * c, h), jnp.float32)
    b1 = 0.1 * jax.random.normal(ks[1], (1, h), jnp.float32)
    gamma = 1.0 + 0.1 * jax.random.normal(ks[2], (1, h), jnp.float32)
    beta = 0.05 * jax.random.normal(ks[3], (1, h), jnp.float32)
    run_mean = jnp.zeros((1, h), jnp.float32)                     # BatchNorm1d eval
    run_var = jnp.ones((1, h), jnp.float32)
    eps = 1e-5
    bn_scale = gamma / jnp.sqrt(run_var + eps)
    bn_shift = beta - run_mean * bn_scale
    w2 = 0.1 * jax.random.normal(ks[4], (h, cr), jnp.float32)
    b2 = 0.1 * jax.random.normal(ks[5], (1, cr), jnp.float32)
    wl = 0.1 * jax.random.normal(ks[6], (c, out_channels), jnp.float32)
    bl = jnp.zeros((1, out_channels), jnp.float32)
    return dict(w1=w1, b1=b1, bn_scale=bn_scale, bn_shift=bn_shift,
                w2=w2, b2=b2, wl=wl, bl=bl)


if __name__ == "__main__":
    N, C, OUT_C, K, R = 64, 8, 16, 8, 4

    key = jax.random.PRNGKey(0)
    k_x, k_p = jax.random.split(key)
    x = jax.random.normal(k_x, (N, C), jnp.float32)
    params = make_params(k_p, C, OUT_C, R)

    out = jax.block_until_ready(node_shuffle_forward(x, params, k=K, r=R))
    ref = node_shuffle_reference(x, params, k=K, r=R)
    assert out.shape == (N * R, OUT_C), out.shape
    assert jnp.allclose(out, ref, atol=1e-4, rtol=1e-4), \
        float(jnp.max(jnp.abs(out - ref)))

    # tail handling: N not a multiple of the tile / 8 (row padding) and k not a
    # multiple of 8 (neighbour-axis padding)
    N2, K2 = 52, 6
    x2 = jax.random.normal(jax.random.PRNGKey(3), (N2, C), jnp.float32)
    out2 = jax.block_until_ready(node_shuffle_forward(x2, params, k=K2, r=R))
    ref2 = node_shuffle_reference(x2, params, k=K2, r=R)
    assert out2.shape == (N2 * R, OUT_C), out2.shape
    assert jnp.allclose(out2, ref2, atol=1e-4, rtol=1e-4), \
        float(jnp.max(jnp.abs(out2 - ref2)))

    print("KERNEL_OK")
</pallas_src>

<mosaic_0001>
module attributes {stable_mosaic.version = 11 : i64} {
  func.func @kernel(%arg0: i32, %arg1: i32, %arg2: memref<32x8xf32, #tpu.memory_space<vmem>>, %arg3: memref<32x8xf32, #tpu.memory_space<vmem>>, %arg4: memref<32x8xi32, #tpu.memory_space<vmem>>, %arg5: memref<32x40xf32, #tpu.memory_space<vmem>>, %arg6: memref<32x40xf32, #tpu.memory_space<vmem>>) attributes {dimension_semantics = [#tpu.dimension_semantics<parallel>, #tpu.dimension_semantics<arbitrary>], iteration_bounds = array<i64: 2, 2>, scalar_prefetch = 0 : i64, scratch_operands = 2 : i64, tpu.core_type = #tpu.core_type<tc>, window_params = [{transform_indices = @transform_0, window_bounds = array<i64: 32, 8>}, {transform_indices = @transform_1, window_bounds = array<i64: 32, 8>}, {transform_indices = @transform_2, window_bounds = array<i64: 32, 8>}]} {
    %c0_i32 = arith.constant 0 : i32
    %0 = arith.cmpi eq, %arg1, %c0_i32 : i32
    %1 = arith.extui %0 : i1 to i32
    %c0_i32_0 = arith.constant 0 : i32
    %2 = arith.cmpi ne, %1, %c0_i32_0 : i32
    scf.if %2 {
      %cst_72 = arith.constant 0x7F800000 : f32
      %150 = vector.broadcast %cst_72 : f32 to vector<32x8xf32>
      %c0_73 = arith.constant 0 : index
      %c32_74 = arith.constant 32 : index
      %151 = vector.load %arg5[%c0_73, %c32_74] : memref<32x40xf32, #tpu.memory_space<vmem>>, vector<32x8xf32>
      tpu.vector_store %arg5[%c0_73, %c32_74], %150 {strides = array<i32>} : memref<32x40xf32, #tpu.memory_space<vmem>>, vector<32x8xf32>,
      %cst_75 = arith.constant -1.000000e+00 : f32
      %152 = vector.broadcast %cst_75 : f32 to vector<32x8xf32>
      %c0_76 = arith.constant 0 : index
      %c32_77 = arith.constant 32 : index
      %153 = vector.load %arg6[%c0_76, %c32_77] : memref<32x40xf32, #tpu.memory_space<vmem>>, vector<32x8xf32>
      tpu.vector_store %arg6[%c0_76, %c32_77], %152 {strides = array<i32>} : memref<32x40xf32, #tpu.memory_space<vmem>>, vector<32x8xf32>,
    } else {
    }
    %c0 = arith.constant 0 : index
    %c0_1 = arith.constant 0 : index
    %3 = vector.load %arg2[%c0, %c0_1] : memref<32x8xf32, #tpu.memory_space<vmem>>, vector<32x8xf32>
    %c0_2 = arith.constant 0 : index
    %c0_3 = arith.constant 0 : index
    %4 = vector.load %arg3[%c0_2, %c0_3] : memref<32x8xf32, #tpu.memory_space<vmem>>, vector<32x8xf32>
    %cst = arith.constant dense<0.000000e+00> : vector<32x32xf32>
    %5 = tpu.matmul %3, %4, %cst {dimension_numbers = #tpu.dot_dimension_numbers<[1], [1], [0], [0], [0, 0, 1, 0], [], []>} : vector<32x8xf32>, vector<32x8xf32>, vector<32x32xf32> -> vector<32x32xf32>
    %6 = arith.mulf %3, %3 : vector<32x8xf32>
    %cst_4 = arith.constant dense<0.000000e+00> : vector<32xf32>
    %7 = vector.multi_reduction <add>, %6, %cst_4 [1] : vector<32x8xf32> to vector<32xf32>
    %8 = vector.shape_cast %7 : vector<32xf32> to vector<32x1xf32>
    %9 = arith.mulf %4, %4 : vector<32x8xf32>
    %cst_5 = arith.constant dense<0.000000e+00> : vector<32xf32>
    %10 = vector.multi_reduction <add>, %9, %cst_5 [1] : vector<32x8xf32> to vector<32xf32>
    %11 = vector.shape_cast %10 : vector<32xf32> to vector<32x1xf32>
    %12 = tpu.transpose %11, [1, 0] : vector<32x1xf32> -> vector<1x32xf32>
    %13 = vector.broadcast %8 : vector<32x1xf32> to vector<32x32xf32>
    %14 = vector.broadcast %12 : vector<1x32xf32> to vector<32x32xf32>
    %15 = arith.addf %13, %14 : vector<32x32xf32>
    %cst_6 = arith.constant 2.000000e+00 : f32
    %16 = vector.broadcast %cst_6 : f32 to vector<32x32xf32>
    %17 = arith.mulf %16, %5 : vector<32x32xf32>
    %18 = arith.subf %15, %17 : vector<32x32xf32>
    %c32_i32 = arith.constant 32 : i32
    %19 = arith.muli %arg1, %c32_i32 : i32
    %20 = tpu.iota {dimensions = array<i32: 1>} : vector<32x32xi32>
    %21 = vector.broadcast %19 : i32 to vector<32x32xi32>
    %22 = arith.addi %21, %20 : vector<32x32xi32>
    %c64_i32 = arith.constant 64 : i32
    %23 = vector.broadcast %c64_i32 : i32 to vector<32x32xi32>
    %24 = arith.cmpi slt, %22, %23 : vector<32x32xi32>
    %cst_7 = arith.constant 0x7F800000 : f32
    %25 = vector.broadcast %cst_7 : f32 to vector<32x32xf32>
    %26 = arith.select %24, %18, %25 : vector<32x32xi1>, vector<32x32xf32>
    %c0_8 = arith.constant 0 : index
    %c0_9 = arith.constant 0 : index
    %27 = vector.load %arg5[%c0_8, %c0_9] : memref<32x40xf32, #tpu.memory_space<vmem>>, vector<32x32xf32>
    tpu.vector_store %arg5[%c0_8, %c0_9], %26 {strides = array<i32>} : memref<32x40xf32, #tpu.memory_space<vmem>>, vector<32x32xf32>,
    %28 = arith.sitofp %22 : vector<32x32xi32> to vector<32x32xf32>
    %c0_10 = arith.constant 0 : index
    %c0_11 = arith.constant 0 : index
    %29 = vector.load %arg6[%c0_10, %c0_11] : memref<32x40xf32, #tpu.memory_space<vmem>>, vector<32x32xf32>
    tpu.vector_store %arg6[%c0_10, %c0_11], %28 {strides = array<i32>} : memref<32x40xf32, #tpu.memory_space<vmem>>, vector<32x32xf32>,
    %c0_12 = arith.constant 0 : index
    %c0_13 = arith.constant 0 : index
    %30 = vector.load %arg5[%c0_12, %c0_13] : memref<32x40xf32, #tpu.memory_space<vmem>>, vector<32x40xf32>
    %c0_14 = arith.constant 0 : index
    %c0_15 = arith.constant 0 : index
    %31 = vector.load %arg6[%c0_14, %c0_15] : memref<32x40xf32, #tpu.memory_space<vmem>>, vector<32x40xf32>
    %cst_16 = arith.constant dense<0x7F800000> : vector<32xf32>
    %32 = vector.multi_reduction <minimumf>, %30, %cst_16 [1] : vector<32x40xf32> to vector<32xf32>
    %33 = vector.shape_cast %32 : vector<32xf32> to vector<32x1xf32>
    %34 = vector.broadcast %33 : vector<32x1xf32> to vector<32x40xf32>
    %35 = arith.cmpf oeq, %30, %34 : vector<32x40xf32>
    %cst_17 = arith.constant 3.000000e+38 : f32
    %36 = vector.broadcast %cst_17 : f32 to vector<32x40xf32>
    %37 = arith.select %35, %31, %36 : vector<32x40xi1>, vector<32x40xf32>
    %cst_18 = arith.constant dense<0x7F800000> : vector<32xf32>
    %38 = vector.multi_reduction <minimumf>, %37, %cst_18 [1] : vector<32x40xf32> to vector<32xf32>
    %39 = vector.shape_cast %38 : vector<32xf32> to vector<32x1xf32>
    %c0_19 = arith.constant 0 : index
    %c32 = arith.constant 32 : index
    %40 = vector.load %arg5[%c0_19, %c32] : memref<32x40xf32, #tpu.memory_space<vmem>>, vector<32x1xf32>
    tpu.vector_store %arg5[%c0_19, %c32], %33 {strides = array<i32>} : memref<32x40xf32, #tpu.memory_space<vmem>>, vector<32x1xf32>,
    %c0_20 = arith.constant 0 : index
    %c32_21 = arith.constant 32 : index
    %41 = vector.load %arg6[%c0_20, %c32_21] : memref<32x40xf32, #tpu.memory_space<vmem>>, vector<32x1xf32>
    tpu.vector_store %arg6[%c0_20, %c32_21], %39 {strides = array<i32>} : memref<32x40xf32, #tpu.memory_space<vmem>>, vector<32x1xf32>,
    %42 = vector.broadcast %39 : vector<32x1xf32> to vector<32x40xf32>
    %43 = arith.cmpf oeq, %31, %42 : vector<32x40xf32>
    %44 = arith.andi %35, %43 : vector<32x40xi1>
    %cst_22 = arith.constant 0x7F800000 : f32
    %45 = vector.broadcast %cst_22 : f32 to vector<32x40xf32>
    %46 = arith.select %44, %45, %30 : vector<32x40xi1>, vector<32x40xf32>
    %cst_23 = arith.constant dense<0x7F800000> : vector<32xf32>
    %47 = vector.multi_reduction <minimumf>, %46, %cst_23 [1] : vector<32x40xf32> to vector<32xf32>
    %48 = vector.shape_cast %47 : vector<32xf32> to vector<32x1xf32>
    %49 = vector.broadcast %48 : vector<32x1xf32> to vector<32x40xf32>
    %50 = arith.cmpf oeq, %46, %49 : vector<32x40xf32>
    %cst_24 = arith.constant 3.000000e+38 : f32
    %51 = vector.broadcast %cst_24 : f32 to vector<32x40xf32>
    %52 = arith.select %50, %31, %51 : vector<32x40xi1>, vector<32x40xf32>
    %cst_25 = arith.constant dense<0x7F800000> : vector<32xf32>
    %53 = vector.multi_reduction <minimumf>, %52, %cst_25 [1] : vector<32x40xf32> to vector<32xf32>
    %54 = vector.shape_cast %53 : vector<32xf32> to vector<32x1xf32>
    %c0_26 = arith.constant 0 : index
    %c33 = arith.constant 33 : index
    %55 = vector.load %arg5[%c0_26, %c33] : memref<32x40xf32, #tpu.memory_space<vmem>>, vector<32x1xf32>
    tpu.vector_store %arg5[%c0_26, %c33], %48 {strides = array<i32>} : memref<32x40xf32, #tpu.memory_space<vmem>>, vector<32x1xf32>,
    %c0_27 = arith.constant 0 : index
    %c33_28 = arith.constant 33 : index
    %56 = vector.load %arg6[%c0_27, %c33_28] : memref<32x40xf32, #tpu.memory_space<vmem>>, vector<32x1xf32>
    tpu.vector_store %arg6[%c0_27, %c33_28], %54 {strides = array<i32>} : memref<32x40xf32, #tpu.memory_space<vmem>>, vector<32x1xf32>,
    %57 = vector.broadcast %54 : vector<32x1xf32> to vector<32x40xf32>
    %58 = arith.cmpf oeq, %31, %57 : vector<32x40xf32>
    %59 = arith.andi %50, %58 : vector<32x40xi1>
    %cst_29 = arith.constant 0x7F800000 : f32
    %60 = vector.broadcast %cst_29 : f32 to vector<32x40xf32>
    %61 = arith.select %59, %60, %46 : vector<32x40xi1>, vector<32x40xf32>
    %cst_30 = arith.constant dense<0x7F800000> : vector<32xf32>
    %62 = vector.multi_reduction <minimumf>, %61, %cst_30 [1] : vector<32x40xf32> to vector<32xf32>
    %63 = vector.shape_cast %62 : vector<32xf32> to vector<32x1xf32>
    %64 = vector.broadcast %63 : vector<32x1xf32> to vector<32x40xf32>
    %65 = arith.cmpf oeq, %61, %64 : vector<32x40xf32>
    %cst_31 = arith.constant 3.000000e+38 : f32
    %66 = vector.broadcast %cst_31 : f32 to vector<32x40xf32>
    %67 = arith.select %65, %31, %66 : vector<32x40xi1>, vector<32x40xf32>
    %cst_32 = arith.constant dense<0x7F800000> : vector<32xf32>
    %68 = vector.multi_reduction <minimumf>, %67, %cst_32 [1] : vector<32x40xf32> to vector<32xf32>
    %69 = vector.shape_cast %68 : vector<32xf32> to vector<32x1xf32>
    %c0_33 = arith.constant 0 : index
    %c34 = arith.constant 34 : index
    %70 = vector.load %arg5[%c0_33, %c34] : memref<32x40xf32, #tpu.memory_space<vmem>>, vector<32x1xf32>
    tpu.vector_store %arg5[%c0_33, %c34], %63 {strides = array<i32>} : memref<32x40xf32, #tpu.memory_space<vmem>>, vector<32x1xf32>,
    %c0_34 = arith.constant 0 : index
    %c34_35 = arith.constant 34 : index
    %71 = vector.load %arg6[%c0_34, %c34_35] : memref<32x40xf32, #tpu.memory_space<vmem>>, vector<32x1xf32>
    tpu.vector_store %arg6[%c0_34, %c34_35], %69 {strides = array<i32>} : memref<32x40xf32, #tpu.memory_space<vmem>>, vector<32x1xf32>,
    %72 = vector.broadcast %69 : vector<32x1xf32> to vector<32x40xf32>
    %73 = arith.cmpf oeq, %31, %72 : vector<32x40xf32>
    %74 = arith.andi %65, %73 : vector<32x40xi1>
    %cst_36 = arith.constant 0x7F800000 : f32
    %75 = vector.broadcast %cst_36 : f32 to vector<32x40xf32>
    %76 = arith.select %74, %75, %61 : vector<32x40xi1>, vector<32x40xf32>
    %cst_37 = arith.constant dense<0x7F800000> : vector<32xf32>
    %77 = vector.multi_reduction <minimumf>, %76, %cst_37 [1] : vector<32x40xf32> to vector<32xf32>
    %78 = vector.shape_cast %77 : vector<32xf32> to vector<32x1xf32>
    %79 = vector.broadcast %78 : vector<32x1xf32> to vector<32x40xf32>
    %80 = arith.cmpf oeq, %76, %79 : vector<32x40xf32>
    %cst_38 = arith.constant 3.000000e+38 : f32
    %81 = vector.broadcast %cst_38 : f32 to vector<32x40xf32>
    %82 = arith.select %80, %31, %81 : vector<32x40xi1>, vector<32x40xf32>
    %cst_39 = arith.constant dense<0x7F800000> : vector<32xf32>
    %83 = vector.multi_reduction <minimumf>, %82, %cst_39 [1] : vector<32x40xf32> to vector<32xf32>
    %84 = vector.shape_cast %83 : vector<32xf32> to vector<32x1xf32>
    %c0_40 = arith.constant 0 : index
    %c35 = arith.constant 35 : index
    %85 = vector.load %arg5[%c0_40, %c35] : memref<32x40xf32, #tpu.memory_space<vmem>>, vector<32x1xf32>
    tpu.vector_store %arg5[%c0_40, %c35], %78 {strides = array<i32>} : memref<32x40xf32, #tpu.memory_space<vmem>>, vector<32x1xf32>,
    %c0_41 = arith.constant 0 : index
    %c35_42 = arith.constant 35 : index
    %86 = vector.load %arg6[%c0_41, %c35_42] : memref<32x40xf32, #tpu.memory_space<vmem>>, vector<32x1xf32>
    tpu.vector_store %arg6[%c0_41, %c35_42], %84 {strides = array<i32>} : memref<32x40xf32, #tpu.memory_space<vmem>>, vector<32x1xf32>,
    %87 = vector.broadcast %84 : vector<32x1xf32> to vector<32x40xf32>
    %88 = arith.cmpf oeq, %31, %87 : vector<32x40xf32>
    %89 = arith.andi %80, %88 : vector<32x40xi1>
    %cst_43 = arith.constant 0x7F800000 : f32
    %90 = vector.broadcast %cst_43 : f32 to vector<32x40xf32>
    %91 = arith.select %89, %90, %76 : vector<32x40xi1>, vector<32x40xf32>
    %cst_44 = arith.constant dense<0x7F800000> : vector<32xf32>
    %92 = vector.multi_reduction <minimumf>, %91, %cst_44 [1] : vector<32x40xf32> to vector<32xf32>
    %93 = vector.shape_cast %92 : vector<32xf32> to vector<32x1xf32>
    %94 = vector.broadcast %93 : vector<32x1xf32> to vector<32x40xf32>
    %95 = arith.cmpf oeq, %91, %94 : vector<32x40xf32>
    %cst_45 = arith.constant 3.000000e+38 : f32
    %96 = vector.broadcast %cst_45 : f32 to vector<32x40xf32>
    %97 = arith.select %95, %31, %96 : vector<32x40xi1>, vector<32x40xf32>
    %cst_46 = arith.constant dense<0x7F800000> : vector<32xf32>
    %98 = vector.multi_reduction <minimumf>, %97, %cst_46 [1] : vector<32x40xf32> to vector<32xf32>
    %99 = vector.shape_cast %98 : vector<32xf32> to vector<32x1xf32>
    %c0_47 = arith.constant 0 : index
    %c36 = arith.constant 36 : index
    %100 = vector.load %arg5[%c0_47, %c36] : memref<32x40xf32, #tpu.memory_space<vmem>>, vector<32x1xf32>
    tpu.vector_store %arg5[%c0_47, %c36], %93 {strides = array<i32>} : memref<32x40xf32, #tpu.memory_space<vmem>>, vector<32x1xf32>,
    %c0_48 = arith.constant 0 : index
    %c36_49 = arith.constant 36 : index
    %101 = vector.load %arg6[%c0_48, %c36_49] : memref<32x40xf32, #tpu.memory_space<vmem>>, vector<32x1xf32>
    tpu.vector_store %arg6[%c0_48, %c36_49], %99 {strides = array<i32>} : memref<32x40xf32, #tpu.memory_space<vmem>>, vector<32x1xf32>,
    %102 = vector.broadcast %99 : vector<32x1xf32> to vector<32x40xf32>
    %103 = arith.cmpf oeq, %31, %102 : vector<32x40xf32>
    %104 = arith.andi %95, %103 : vector<32x40xi1>
    %cst_50 = arith.constant 0x7F800000 : f32
    %105 = vector.broadcast %cst_50 : f32 to vector<32x40xf32>
    %106 = arith.select %104, %105, %91 : vector<32x40xi1>, vector<32x40xf32>
    %cst_51 = arith.constant dense<0x7F800000> : vector<32xf32>
    %107 = vector.multi_reduction <minimumf>, %106, %cst_51 [1] : vector<32x40xf32> to vector<32xf32>
    %108 = vector.shape_cast %107 : vector<32xf32> to vector<32x1xf32>
    %109 = vector.broadcast %108 : vector<32x1xf32> to vector<32x40xf32>
    %110 = arith.cmpf oeq, %106, %109 : vector<32x40xf32>
    %cst_52 = arith.constant 3.000000e+38 : f32
    %111 = vector.broadcast %cst_52 : f32 to vector<32x40xf32>
    %112 = arith.select %110, %31, %111 : vector<32x40xi1>, vector<32x40xf32>
    %cst_53 = arith.constant dense<0x7F800000> : vector<32xf32>
    %113 = vector.multi_reduction <minimumf>, %112, %cst_53 [1] : vector<32x40xf32> to vector<32xf32>
    %114 = vector.shape_cast %113 : vector<32xf32> to vector<32x1xf32>
    %c0_54 = arith.constant 0 : index
    %c37 = arith.constant 37 : index
    %115 = vector.load %arg5[%c0_54, %c37] : memref<32x40xf32, #tpu.memory_space<vmem>>, vector<32x1xf32>
    tpu.vector_store %arg5[%c0_54, %c37], %108 {strides = array<i32>} : memref<32x40xf32, #tpu.memory_space<vmem>>, vector<32x1xf32>,
    %c0_55 = arith.constant 0 : index
    %c37_56 = arith.constant 37 : index
    %116 = vector.load %arg6[%c0_55, %c37_56] : memref<32x40xf32, #tpu.memory_space<vmem>>, vector<32x1xf32>
    tpu.vector_store %arg6[%c0_55, %c37_56], %114 {strides = array<i32>} : memref<32x40xf32, #tpu.memory_space<vmem>>, vector<32x1xf32>,
    %117 = vector.broadcast %114 : vector<32x1xf32> to vector<32x40xf32>
    %118 = arith.cmpf oeq, %31, %117 : vector<32x40xf32>
    %119 = arith.andi %110, %118 : vector<32x40xi1>
    %cst_57 = arith.constant 0x7F800000 : f32
    %120 = vector.broadcast %cst_57 : f32 to vector<32x40xf32>
    %121 = arith.select %119, %120, %106 : vector<32x40xi1>, vector<32x40xf32>
    %cst_58 = arith.constant dense<0x7F800000> : vector<32xf32>
    %122 = vector.multi_reduction <minimumf>, %121, %cst_58 [1] : vector<32x40xf32> to vector<32xf32>
    %123 = vector.shape_cast %122 : vector<32xf32> to vector<32x1xf32>
    %124 = vector.broadcast %123 : vector<32x1xf32> to vector<32x40xf32>
    %125 = arith.cmpf oeq, %121, %124 : vector<32x40xf32>
    %cst_59 = arith.constant 3.000000e+38 : f32
    %126 = vector.broadcast %cst_59 : f32 to vector<32x40xf32>
    %127 = arith.select %125, %31, %126 : vector<32x40xi1>, vector<32x40xf32>
    %cst_60 = arith.constant dense<0x7F800000> : vector<32xf32>
    %128 = vector.multi_reduction <minimumf>, %127, %cst_60 [1] : vector<32x40xf32> to vector<32xf32>
    %129 = vector.shape_cast %128 : vector<32xf32> to vector<32x1xf32>
    %c0_61 = arith.constant 0 : index
    %c38 = arith.constant 38 : index
    %130 = vector.load %arg5[%c0_61, %c38] : memref<32x40xf32, #tpu.memory_space<vmem>>, vector<32x1xf32>
    tpu.vector_store %arg5[%c0_61, %c38], %123 {strides = array<i32>} : memref<32x40xf32, #tpu.memory_space<vmem>>, vector<32x1xf32>,
    %c0_62 = arith.constant 0 : index
    %c38_63 = arith.constant 38 : index
    %131 = vector.load %arg6[%c0_62, %c38_63] : memref<32x40xf32, #tpu.memory_space<vmem>>, vector<32x1xf32>
    tpu.vector_store %arg6[%c0_62, %c38_63], %129 {strides = array<i32>} : memref<32x40xf32, #tpu.memory_space<vmem>>, vector<32x1xf32>,
    %132 = vector.broadcast %129 : vector<32x1xf32> to vector<32x40xf32>
    %133 = arith.cmpf oeq, %31, %132 : vector<32x40xf32>
    %134 = arith.andi %125, %133 : vector<32x40xi1>
    %cst_64 = arith.constant 0x7F800000 : f32
    %135 = vector.broadcast %cst_64 : f32 to vector<32x40xf32>
    %136 = arith.select %134, %135, %121 : vector<32x40xi1>, vector<32x40xf32>
    %cst_65 = arith.constant dense<0x7F800000> : vector<32xf32>
    %137 = vector.multi_reduction <minimumf>, %136, %cst_65 [1] : vector<32x40xf32> to vector<32xf32>
    %138 = vector.shape_cast %137 : vector<32xf32> to vector<32x1xf32>
    %139 = vector.broadcast %138 : vector<32x1xf32> to vector<32x40xf32>
    %140 = arith.cmpf oeq, %136, %139 : vector<32x40xf32>
    %cst_66 = arith.constant 3.000000e+38 : f32
    %141 = vector.broadcast %cst_66 : f32 to vector<32x40xf32>
    %142 = arith.select %140, %31, %141 : vector<32x40xi1>, vector<32x40xf32>
    %cst_67 = arith.constant dense<0x7F800000> : vector<32xf32>
    %143 = vector.multi_reduction <minimumf>, %142, %cst_67 [1] : vector<32x40xf32> to vector<32xf32>
    %144 = vector.shape_cast %143 : vector<32xf32> to vector<32x1xf32>
    %c0_68 = arith.constant 0 : index
    %c39 = arith.constant 39 : index
    %145 = vector.load %arg5[%c0_68, %c39] : memref<32x40xf32, #tpu.memory_space<vmem>>, vector<32x1xf32>
    tpu.vector_store %arg5[%c0_68, %c39], %138 {strides = array<i32>} : memref<32x40xf32, #tpu.memory_space<vmem>>, vector<32x1xf32>,
    %c0_69 = arith.constant 0 : index
    %c39_70 = arith.constant 39 : index
    %146 = vector.load %arg6[%c0_69, %c39_70] : memref<32x40xf32, #tpu.memory_space<vmem>>, vector<32x1xf32>
    tpu.vector_store %arg6[%c0_69, %c39_70], %144 {strides = array<i32>} : memref<32x40xf32, #tpu.memory_space<vmem>>, vector<32x1xf32>,
    %c1_i32 = arith.constant 1 : i32
    %147 = arith.cmpi eq, %arg1, %c1_i32 : i32
    %148 = arith.extui %147 : i1 to i32
    %c0_i32_71 = arith.constant 0 : i32
    %149 = arith.cmpi ne, %148, %c0_i32_71 : i32
    scf.if %149 {
      %c0_72 = arith.constant 0 : index
      %c32_73 = arith.constant 32 : index
      %150 = vector.load %arg6[%c0_72, %c32_73] : memref<32x40xf32, #tpu.memory_space<vmem>>, vector<32x8xf32>
      %151 = arith.fptosi %150 : vector<32x8xf32> to vector<32x8xi32>
      %c0_74 = arith.constant 0 : index
      %c0_75 = arith.constant 0 : index
      %152 = vector.load %arg4[%c0_74, %c0_75] : memref<32x8xi32, #tpu.memory_space<vmem>>, vector<32x8xi32>
      tpu.vector_store %arg4[%c0_74, %c0_75], %151 {strides = array<i32>} : memref<32x8xi32, #tpu.memory_space<vmem>>, vector<32x8xi32>,
    } else {
    }
    return
  }
  func.func @transform_0(%arg0: i32, %arg1: i32) -> (i32, i32) {
    %c0_i32 = arith.constant 0 : i32
    %c0_i32_0 = arith.constant 0 : i32
    return %arg0, %c0_i32 : i32, i32
  }
  func.func @transform_1(%arg0: i32, %arg1: i32) -> (i32, i32) {
    %c0_i32 = arith.constant 0 : i32
    %c0_i32_0 = arith.constant 0 : i32
    return %arg1, %c0_i32 : i32, i32
  }
  func.func @transform_2(%arg0: i32, %arg1: i32) -> (i32, i32) {
    %c0_i32 = arith.constant 0 : i32
    %c0_i32_0 = arith.constant 0 : i32
    return %arg0, %c0_i32 : i32, i32
  }
}

</mosaic_0001>

<llo_original>
// kernel: tpu_custom_call.1
$region0: #{tpu_custom_call.1}
  #allocation0 [shape = 'u32[]', space=smem, size = 0x4, offset = 0x4, fixed_abs, tag = 'smem constant byte address 0x4 - core index']
  #allocation1 [shape = 'u32[72,128]{1,0:T(1,128)}', space=vmem, size = 0x9000, scoped, tag = 'internal scratch']
  #allocation2 [shape = 'f32[32,40]{1,0:T(8,128)}', space=vmem, size = 0x4000, scoped, tag = 'scratch operand']
  #allocation3 [shape = 'f32[32,40]{1,0:T(8,128)}', space=vmem, size = 0x4000, scoped, tag = 'scratch operand']
  %s0 = inlined_call_operand.vmem [shape: f32[64,8], index: 0, kind: input, shape index: {}]
  %s1 = inlined_call_operand.vmem [shape: f32[64,8], index: 1, kind: input, shape index: {}]
  %s2 = inlined_call_operand.vmem [shape: s32[64,8], index: 2, kind: output, shape index: {}]
  %s3 = sld [smem:[#allocation0]]
  $region49: #{tpu_custom_call.1} parent=0
    _
  %s5 = ssub.s32 1, %s3
  %s6 = scalar_select 0, %s5, %s3
  loop: start=0, step=1, limit=6
  $region2: #{tpu_custom_call.1} parent=0 // loop_pre_header
    _
  $region3: #{tpu_custom_call.1} parent=0 // loop_header
    %s8 = sphi 0, %s12
    %p9 = scmp.ge.s32.totalorder %s8, 6
    %s15 = sphi 0, %s27
    %s16 = sphi 0, %s23
    %s17 = sphi 0, %s15
    %s18 = sphi 0, %s16
    %s19 = sphi 0, %s17
    %s20 = sphi 0, %s18
    %s30 = sphi 0, %s32
    %s33 = sphi 0, %s30
    %s34 = sphi 0, %s33
    %s50 = sphi 0, %s34
    %s56 = sphi 0, %s58
    %s59 = sphi 0, %s56
    %s60 = sphi 0, %s59
    %s76 = sphi 0, %s60
    %s82 = sphi 0, %s84
    %s85 = sphi 0, %s82
    %s86 = sphi 0, %s85
    %s102 = sphi 0, %s86
  $region4: #{tpu_custom_call.1} parent=0 // loop_header_branch
    %11 = sbr.rel (%p9) target = $region8
  $region5: #{tpu_custom_call.1} parent=0 // loop_body
    %s13 = ssub.s32 %s8, 1
    %s14 = ssub.s32 %s8, 2
    %s21 = sadd.s32 1, %s16
    %p22 = scmp.ge.s32.totalorder %s21, 2
    %s23 = scalar_select %p22, 0, %s21
    %s24 = sadd.s32 1, %s15
    %s25 = scalar_select %p22, %s24, %s15
    %p26 = scmp.ge.s32.totalorder %s25, 2
    %s27 = scalar_select %p26, 0, %s25
    %s28 = ssub.s32 %s15, %s27
    %p29 = scmp.eq.s32.totalorder %s28, 0
    %s31 = sadd.s32 %s30, 1
    %s32 = scalar_select %p29, %s30, %s31
    %p35 = pneg %p29
    %p36 = scmp.eq.s32.totalorder %s8, 3
    %p37 = por %p35, %p36
    %p38 = scmp.ne.s32.totalorder %s30, %s33
    %p39 = scmp.eq.s32.totalorder %s8, 0
    %p40 = por %p38, %p39
    %p41 = scmp.ne.s32.totalorder %s30, %s33
    %p42 = scmp.eq.s32.totalorder %s13, 3
    %p43 = por %p41, %p42
    %p44 = scmp.ne.s32.totalorder %s33, %s34
    %p45 = scmp.eq.s32.totalorder %s13, 0
    %p46 = por %p44, %p45
    %p47 = scmp.ne.s32.totalorder %s33, %s34
    %p48 = scmp.eq.s32.totalorder %s14, 3
    %p49 = por %p47, %p48
    %p51 = scmp.ne.s32.totalorder %s34, %s50
    %p52 = scmp.eq.s32.totalorder %s14, 0
    %p53 = por %p51, %p52
    %s54 = ssub.s32 %s16, %s23
    %p55 = scmp.eq.s32.totalorder %s54, 0
    %s57 = sadd.s32 %s56, 1
    %s58 = scalar_select %p55, %s56, %s57
    %p61 = pneg %p55
    %p62 = scmp.eq.s32.totalorder %s8, 3
    %p63 = por %p61, %p62
    %p64 = scmp.ne.s32.totalorder %s56, %s59
    %p65 = scmp.eq.s32.totalorder %s8, 0
    %p66 = por %p64, %p65
    %p67 = scmp.ne.s32.totalorder %s56, %s59
    %p68 = scmp.eq.s32.totalorder %s13, 3
    %p69 = por %p67, %p68
    %p70 = scmp.ne.s32.totalorder %s59, %s60
    %p71 = scmp.eq.s32.totalorder %s13, 0
    %p72 = por %p70, %p71
    %p73 = scmp.ne.s32.totalorder %s59, %s60
    %p74 = scmp.eq.s32.totalorder %s14, 3
    %p75 = por %p73, %p74
    %p77 = scmp.ne.s32.totalorder %s60, %s76
    %p78 = scmp.eq.s32.totalorder %s14, 0
    %p79 = por %p77, %p78
    %s80 = ssub.s32 %s15, %s27
    %p81 = scmp.eq.s32.totalorder %s80, 0
    %s83 = sadd.s32 %s82, 1
    %s84 = scalar_select %p81, %s82, %s83
    %p87 = pneg %p81
    %p88 = scmp.eq.s32.totalorder %s8, 3
    %p89 = por %p87, %p88
    %p90 = scmp.ne.s32.totalorder %s82, %s85
    %p91 = scmp.eq.s32.totalorder %s8, 0
    %p92 = por %p90, %p91
    %p93 = scmp.ne.s32.totalorder %s82, %s85
    %p94 = scmp.eq.s32.totalorder %s13, 3
    %p95 = por %p93, %p94
    %p96 = scmp.ne.s32.totalorder %s85, %s86
    %p97 = scmp.eq.s32.totalorder %s13, 0
    %p98 = por %p96, %p97
    %p99 = scmp.ne.s32.totalorder %s85, %s86
    %p100 = scmp.eq.s32.totalorder %s14, 3
    %p101 = por %p99, %p100
    %p103 = scmp.ne.s32.totalorder %s86, %s102
    %p104 = scmp.eq.s32.totalorder %s14, 0
    %p105 = por %p103, %p104
    %p106 = scmp.le.s32.totalorder 1, %s8
    %p107 = scmp.lt.s32.totalorder %s8, 5
    %p108 = pnand %p106, %p107
    %p109 = pneg %p108
    // Predicated region
    $region9: #{tpu_custom_call.1} parent=5 // pred_check
      _
    $region10: #{tpu_custom_call.1} parent=5 // pred_check_branch
      %111 = sbr.rel (%p108) target = $region12
    $region11: #{tpu_custom_call.1} parent=5 // pred_region
      %s112 = ssub.s32 %s8, 1
    $region12: #{tpu_custom_call.1} parent=5 // pred_fallthru
      _
    %p113 = scmp.lt.s32.totalorder %s8, 4
    // Predicated region
    $region13: #{tpu_custom_call.1} parent=5 // pred_check
      %p114 = pneg %p113
    $region14: #{tpu_custom_call.1} parent=5 // pred_check_branch
      %116 = sbr.rel (%p114) target = $region16
    $region15: #{tpu_custom_call.1} parent=5 // pred_region
      // Predicated region
      $region17: #{tpu_custom_call.1} parent=15 // pred_check
        %p117 = pneg %p40
      $region18: #{tpu_custom_call.1} parent=15 // pred_check_branch
        %119 = sbr.rel (%p117) target = $region20
      $region19: #{tpu_custom_call.1} parent=15 // pred_region
        %s120 = smul.u32 4, %s15
        %p121 = scmp.lt.s32.totalorder %s120, 7
        %s122 = scalar_select %p121, %s120, 7
        %s123 = smul.addr %s122, 8
        %s124 = scalar_lea.vmem %s0, %s123
        %s125 = smul.u32 4, %s15
      $region20: #{tpu_custom_call.1} parent=15 // pred_fallthru
        _
      // Predicated region
      $region21: #{tpu_custom_call.1} parent=15 // pred_check
        %p126 = pneg %p66
      $region22: #{tpu_custom_call.1} parent=15 // pred_check_branch
        %128 = sbr.rel (%p126) target = $region24
      $region23: #{tpu_custom_call.1} parent=15 // pred_region
        %s129 = smul.u32 4, %s16
        %p130 = scmp.lt.s32.totalorder %s129, 7
        %s131 = scalar_select %p130, %s129, 7
        %s132 = smul.addr %s131, 8
        %s133 = scalar_lea.vmem %s1, %s132
        %s134 = smul.u32 4, %s16
      $region24: #{tpu_custom_call.1} parent=15 // pred_fallthru
        _
    $region16: #{tpu_custom_call.1} parent=5 // pred_fallthru
      _
    %p135 = scmp.le.s32.totalorder 1, %s8
    %p136 = scmp.lt.s32.totalorder %s8, 5
    %p137 = pnand %p135, %p136
    %p138 = pneg %p137
    // Predicated region
    $region25: #{tpu_custom_call.1} parent=5 // pred_check
      _
    $region26: #{tpu_custom_call.1} parent=5 // pred_check_branch
      %140 = sbr.rel (%p137) target = $region28
    $region27: #{tpu_custom_call.1} parent=5 // pred_region
      %s141 = ssub.s32 %s8, 1
      %s142 = smul.u32 4, %s17
      %p143 = scmp.lt.s32.totalorder %s142, 7
      %s144 = scalar_select %p143, %s142, 7
      %s145 = smul.addr %s144, 8
      %s146 = scalar_lea.vmem %s0, %s145
      %p147 = pneg %p46
      %p148 = pneg %p43
      %s149 = smul.u32 4, %s18
      %p150 = scmp.lt.s32.totalorder %s149, 7
      %s151 = scalar_select %p150, %s149, 7
      %s152 = smul.addr %s151, 8
      %s153 = scalar_lea.vmem %s1, %s152
      %p154 = pneg %p72
      %p155 = pneg %p69
      %p156 = pneg %p98
      %p157 = pneg %p95
      %s158 = smul.u32 4, %s17
      %p159 = scmp.lt.s32.totalorder %s158, 7
      %s160 = scalar_select %p159, %s158, 7
      %s161 = smul.addr %s160, 8
      %s162 = scalar_lea.vmem %s2, %s161
      %s163 = smul.u32 4, %s17
      %p164 = scmp.lt.s32.totalorder %s163, 7
      %s165 = scalar_select %p164, %s163, 7
      %s166 = smul.addr %s165, 8
      %s167 = scalar_lea.vmem %s0, %s166
      %s168 = smul.u32 4, %s17
      %s169 = smul.u32 4, %s18
      %p170 = scmp.lt.s32.totalorder %s169, 7
      %s171 = scalar_select %p170, %s169, 7
      %s172 = smul.addr %s171, 8
      %s173 = scalar_lea.vmem %s1, %s172
      %s174 = smul.u32 4, %s18
      %s175 = smul.u32 4, %s17
      %p176 = scmp.lt.s32.totalorder %s175, 7
      %s177 = scalar_select %p176, %s175, 7
      %s178 = smul.addr %s177, 8
      %s179 = scalar_lea.vmem %s2, %s178
      %s180 = smul.u32 4, %s17
      %p181 = scmp.eq.s32.totalorder %s18, 0
      // Predicated region
      $region29: #{tpu_custom_call.1} parent=27 // pred_check
        %p182 = pneg %p181
      $region30: #{tpu_custom_call.1} parent=27 // pred_check_branch
        %184 = sbr.rel (%p182) target = $region32
      $region31: #{tpu_custom_call.1} parent=27 // pred_region
        %vm185 = vcmask 326912
        %186 = vst.msk [vmem:[#allocation2] sm:$0xff] %vm185, inf
        %187 = vst.msk [vmem:[#allocation2 + $0x8] sm:$0xff] %vm185, inf
        %188 = vst.msk [vmem:[#allocation2 + $0x10] sm:$0xff] %vm185, inf
        %189 = vst.msk [vmem:[#allocation2 + $0x18] sm:$0xff] %vm185, inf
        %190 = vst.msk [vmem:[#allocation3] sm:$0xff] %vm185, -1.0
        %191 = vst.msk [vmem:[#allocation3 + $0x8] sm:$0xff] %vm185, -1.0
        %192 = vst.msk [vmem:[#allocation3 + $0x10] sm:$0xff] %vm185, -1.0
        %193 = vst.msk [vmem:[#allocation3 + $0x18] sm:$0xff] %vm185, -1.0
      $region32: #{tpu_custom_call.1} parent=27 // pred_fallthru
        _
      %v194 = vld [vmem:[%s167] sm:$0xff]
      %v195 = vld [vmem:[%s167 + $0x8] sm:$0xff]
      %v196 = vld [vmem:[%s167 + $0x10] sm:$0xff]
      %v197 = vld [vmem:[%s167 + $0x18] sm:$0xff]
      %v198 = vld [vmem:[%s173] sm:$0xff]
      %v199 = vld [vmem:[%s173 + $0x8] sm:$0xff]
      %v200 = vld [vmem:[%s173 + $0x10] sm:$0xff]
      %v201 = vld [vmem:[%s173 + $0x18] sm:$0xff]
      %vm202 = vcmask 64512
      %v204 = vsel %vm202, %v194, 0
      %v207 = vsel %vm202, %v195, 0
      %v210 = vsel %vm202, %v196, 0
      %v213 = vsel %vm202, %v197, 0
      %v216 = vsel %vm202, %v198, 0
      %v219 = vsel %vm202, %v199, 0
      %v222 = vsel %vm202, %v200, 0
      %v225 = vsel %vm202, %v201, 0
      %227 = vmatpush.xpose.msra.mxu0 0.0
      %228 = vmatpush.xpose.msra.mxu0 0.0
      %229 = vmatpush.xpose.msra.mxu0 0.0
      %230 = vmatpush.xpose.msra.mxu0 0.0
      %231 = vmatpush.xpose.msra.mxu0 0.0
      %232 = vmatpush.xpose.msra.mxu0 0.0
      %233 = vmatpush.xpose.msra.mxu0 0.0
      %234 = vmatpush.xpose.msra.mxu0 0.0
      %235 = vmatpush.xpose.msra.mxu0 0.0
      %236 = vmatpush.xpose.msra.mxu0 0.0
      %237 = vmatpush.xpose.msra.mxu0 0.0
      %238 = vmatpush.xpose.msra.mxu0 0.0
      %239 = vmatpush.xpose.msra.mxu0 %v225
      %240 = vmatpush.xpose.msra.mxu0 %v222
      %241 = vmatpush.xpose.msra.mxu0 %v219
      %242 = vmatpush.xpose.msra.mxu0 %v216
      %243 = vmatmul.f32.gmra.mxu0 %v204
      %v244 = vpop.f32.mrf.mxu0
      %v245 = vadd.f32 0.0, %v244
      %246 = vmatmul.f32.gmra.mxu0 %v207
      %v247 = vpop.f32.mrf.mxu0
      %v248 = vadd.f32 0.0, %v247
      %249 = vmatmul.f32.gmra.mxu0 %v210
      %v250 = vpop.f32.mrf.mxu0
      %v251 = vadd.f32 0.0, %v250
      %252 = vmatmul.f32.gmra.mxu0 %v213
      %v253 = vpop.f32.mrf.mxu0
      %v254 = vadd.f32 0.0, %v253
      %255 = vdwg.mxu0
      %v256 = vmul.f32 %v194, %v194
      %v257 = vmul.f32 %v195, %v195
      %v258 = vmul.f32 %v196, %v196
      %v259 = vmul.f32 %v197, %v197
      %v260 = vsel %vm202, %v256, 0.0
      %261 = vadd.xlane.f32.xlu0 %v260
      %v262 = vpop.xlane.xlu0 %261
      %v263 = vsel %vm202, %v257, 0.0
      %264 = vadd.xlane.f32.xlu0 %v263
      %v265 = vpop.xlane.xlu0 %264
      %v266 = vsel %vm202, %v258, 0.0
      %267 = vadd.xlane.f32.xlu0 %v266
      %v268 = vpop.xlane.xlu0 %267
      %v269 = vsel %vm202, %v259, 0.0
      %270 = vadd.xlane.f32.xlu0 %v269
      %v271 = vpop.xlane.xlu0 %270
      %v272 = vmul.f32 %v198, %v198
      %v273 = vmul.f32 %v199, %v199
      %v274 = vmul.f32 %v200, %v200
      %v275 = vmul.f32 %v201, %v201
      %v276 = vsel %vm202, %v272, 0.0
      %277 = vadd.xlane.f32.xlu0 %v276
      %v278 = vpop.xlane.xlu0 %277
      %v279 = vsel %vm202, %v273, 0.0
      %280 = vadd.xlane.f32.xlu0 %v279
      %v281 = vpop.xlane.xlu0 %280
      %v282 = vsel %vm202, %v274, 0.0
      %283 = vadd.xlane.f32.xlu0 %v282
      %v284 = vpop.xlane.xlu0 %283
      %v285 = vsel %vm202, %v275, 0.0
      %286 = vadd.xlane.f32.xlu0 %v285
      %v287 = vpop.xlane.xlu0 %286
      %288 = vxpose.xlu0.b32.start [1/16] %v278, 128
      %289 = vxpose.xlu0.b32.cont [2/16] %v281, 128
      %290 = vxpose.xlu0.b32.cont [3/16] %v284, 128
      %291 = vxpose.xlu0.b32.cont [4/16] %v287, 128
      %292 = vxpose.xlu0.b32.cont [5/16] 0.0, 128
      %293 = vxpose.xlu0.b32.cont [6/16] 0.0, 128
      %294 = vxpose.xlu0.b32.cont [7/16] 0.0, 128
      %295 = vxpose.xlu0.b32.cont [8/16] 0.0, 128
      %296 = vxpose.xlu0.b32.cont [9/16] 0.0, 128
      %297 = vxpose.xlu0.b32.cont [10/16] 0.0, 128
      %298 = vxpose.xlu0.b32.cont [11/16] 0.0, 128
      %299 = vxpose.xlu0.b32.cont [12/16] 0.0, 128
      %300 = vxpose.xlu0.b32.cont [13/16] 0.0, 128
      %301 = vxpose.xlu0.b32.cont [14/16] 0.0, 128
      %302 = vxpose.xlu0.b32.cont [15/16] 0.0, 128
      %303 = vxpose.xlu0.b32.end [16/16] 0.0, 128
      %v304 = vpop.trf.xlu0
      %v305 = vpop.trf.xlu0
      %v306 = vpop.trf.xlu0
      %v307 = vpop.trf.xlu0
      %v308 = vpop.trf.xlu0
      %v309 = vpop.trf.xlu0
      %v310 = vpop.trf.xlu0
      %v311 = vpop.trf.xlu0
      %v312 = vpop.trf.xlu0
      %v313 = vpop.trf.xlu0
      %v314 = vpop.trf.xlu0
      %v315 = vpop.trf.xlu0
      %v316 = vpop.trf.xlu0
      %v317 = vpop.trf.xlu0
      %v318 = vpop.trf.xlu0
      %v319 = vpop.trf.xlu0
      %v320 = vperm.slane %v304, 0
      %v321 = vadd.f32 %v262, %v320
      %v322 = vadd.f32 %v265, %v320
      %v323 = vadd.f32 %v268, %v320
      %v324 = vadd.f32 %v271, %v320
      %v325 = vmul.f32 %v245, 2.0
      %v326 = vmul.f32 %v248, 2.0
      %v327 = vmul.f32 %v251, 2.0
      %v328 = vmul.f32 %v254, 2.0
      %v329 = vsub.f32 %v321, %v325
      %v330 = vsub.f32 %v322, %v326
      %v331 = vsub.f32 %v323, %v327
      %v332 = vsub.f32 %v324, %v328
      %s333 = smul.u32 %s18, 32
      %v334 = vlaneseq
      %v335 = vand.u32 %v334, 127
      %v336 = vstv %s333
      %v337 = vadd.s32 %v336, %v335
      %vm338 = vcmp.lt.s32.totalorder %v337, 64
      %v339 = vsel %vm338, %v329, inf
      %v340 = vsel %vm338, %v330, inf
      %v341 = vsel %vm338, %v331, inf
      %v342 = vsel %vm338, %v332, inf
      %vm343 = vcmask 261120
      %344 = vst.msk [vmem:[#allocation2] sm:$0xff] %vm343, %v339
      %345 = vst.msk [vmem:[#allocation2 + $0x8] sm:$0xff] %vm343, %v340
      %346 = vst.msk [vmem:[#allocation2 + $0x10] sm:$0xff] %vm343, %v341
      %347 = vst.msk [vmem:[#allocation2 + $0x18] sm:$0xff] %vm343, %v342
      %v348 = vcvt.s32.f32 %v337
      %349 = vst.msk [vmem:[#allocation3] sm:$0xff] %vm343, %v348
      %350 = vst.msk [vmem:[#allocation3 + $0x8] sm:$0xff] %vm343, %v348
      %351 = vst.msk [vmem:[#allocation3 + $0x10] sm:$0xff] %vm343, %v348
      %352 = vst.msk [vmem:[#allocation3 + $0x18] sm:$0xff] %vm343, %v348
      %v353 = vld [vmem:[#allocation2] sm:$0xff]
      %v354 = vld [vmem:[#allocation2 + $0x8] sm:$0xff]
      %v355 = vld [vmem:[#allocation2 + $0x10] sm:$0xff]
      %v356 = vld [vmem:[#allocation2 + $0x18] sm:$0xff]
      %v357 = vld [vmem:[#allocation3] sm:$0xff]
      %v358 = vld [vmem:[#allocation3 + $0x8] sm:$0xff]
      %v359 = vld [vmem:[#allocation3 + $0x10] sm:$0xff]
      %v360 = vld [vmem:[#allocation3 + $0x18] sm:$0xff]
      %vm361 = vcmask 326656
      %v362 = vsel %vm361, %v353, inf
      %363 = vmin.xlane.f32.xlu0 %v362
      %v364 = vpop.xlane.xlu0 %363
      %v365 = vsel %vm361, %v354, inf
      %366 = vmin.xlane.f32.xlu0 %v365
      %v367 = vpop.xlane.xlu0 %366
      %v368 = vsel %vm361, %v355, inf
      %369 = vmin.xlane.f32.xlu0 %v368
      %v370 = vpop.xlane.xlu0 %369
      %v371 = vsel %vm361, %v356, inf
      %372 = vmin.xlane.f32.xlu0 %v371
      %v373 = vpop.xlane.xlu0 %372
      %vm374 = vcmp.eq.f32.partialorder %v353, %v364
      %vm375 = vcmp.eq.f32.partialorder %v354, %v367
      %vm376 = vcmp.eq.f32.partialorder %v355, %v370
      %vm377 = vcmp.eq.f32.partialorder %v356, %v373
      %v378 = vsel %vm374, %v357, 3e+38
      %v379 = vsel %vm375, %v358, 3e+38
      %v380 = vsel %vm376, %v359, 3e+38
      %v381 = vsel %vm377, %v360, 3e+38
      %v382 = vsel %vm361, %v378, inf
      %383 = vmin.xlane.f32.xlu0 %v382
      %v384 = vpop.xlane.xlu0 %383
      %v385 = vsel %vm361, %v379, inf
      %386 = vmin.xlane.f32.xlu0 %v385
      %v387 = vpop.xlane.xlu0 %386
      %v388 = vsel %vm361, %v380, inf
      %389 = vmin.xlane.f32.xlu0 %v388
      %v390 = vpop.xlane.xlu0 %389
      %v391 = vsel %vm361, %v381, inf
      %392 = vmin.xlane.f32.xlu0 %v391
      %v393 = vpop.xlane.xlu0 %392
      %vm394 = vcmask 269568
      %395 = vst.msk [vmem:[#allocation2] sm:$0xff] %vm394, %v364
      %396 = vst.msk [vmem:[#allocation2 + $0x8] sm:$0xff] %vm394, %v367
      %397 = vst.msk [vmem:[#allocation2 + $0x10] sm:$0xff] %vm394, %v370
      %398 = vst.msk [vmem:[#allocation2 + $0x18] sm:$0xff] %vm394, %v373
      %399 = vst.msk [vmem:[#allocation3] sm:$0xff] %vm394, %v384
      %400 = vst.msk [vmem:[#allocation3 + $0x8] sm:$0xff] %vm394, %v387
      %401 = vst.msk [vmem:[#allocation3 + $0x10] sm:$0xff] %vm394, %v390
      %402 = vst.msk [vmem:[#allocation3 + $0x18] sm:$0xff] %vm394, %v393
      %vm403 = vcmp.eq.f32.partialorder %v357, %v384
      %vm404 = vcmp.eq.f32.partialorder %v358, %v387
      %vm405 = vcmp.eq.f32.partialorder %v359, %v390
      %vm406 = vcmp.eq.f32.partialorder %v360, %v393
      %vm407 = vmand %vm374, %vm403
      %vm408 = vmand %vm375, %vm404
      %vm409 = vmand %vm376, %vm405
      %vm410 = vmand %vm377, %vm406
      %v411 = vsel %vm407, inf, %v353
      %v412 = vsel %vm408, inf, %v354
      %v413 = vsel %vm409, inf, %v355
      %v414 = vsel %vm410, inf, %v356
      %v415 = vsel %vm361, %v411, inf
      %416 = vmin.xlane.f32.xlu0 %v415
      %v417 = vpop.xlane.xlu0 %416
      %v418 = vsel %vm361, %v412, inf
      %419 = vmin.xlane.f32.xlu0 %v418
      %v420 = vpop.xlane.xlu0 %419
      %v421 = vsel %vm361, %v413, inf
      %422 = vmin.xlane.f32.xlu0 %v421
      %v423 = vpop.xlane.xlu0 %422
      %v424 = vsel %vm361, %v414, inf
      %425 = vmin.xlane.f32.xlu0 %v424
      %v426 = vpop.xlane.xlu0 %425
      %vm427 = vcmp.eq.f32.partialorder %v411, %v417
      %vm428 = vcmp.eq.f32.partialorder %v412, %v420
      %vm429 = vcmp.eq.f32.partialorder %v413, %v423
      %vm430 = vcmp.eq.f32.partialorder %v414, %v426
      %v431 = vsel %vm427, %v357, 3e+38
      %v432 = vsel %vm428, %v358, 3e+38
      %v433 = vsel %vm429, %v359, 3e+38
      %v434 = vsel %vm430, %v360, 3e+38
      %v435 = vsel %vm361, %v431, inf
      %436 = vmin.xlane.f32.xlu0 %v435
      %v437 = vpop.xlane.xlu0 %436
      %v438 = vsel %vm361, %v432, inf
      %439 = vmin.xlane.f32.xlu0 %v438
      %v440 = vpop.xlane.xlu0 %439
      %v441 = vsel %vm361, %v433, inf
      %442 = vmin.xlane.f32.xlu0 %v441
      %v443 = vpop.xlane.xlu0 %442
      %v444 = vsel %vm361, %v434, inf
      %445 = vmin.xlane.f32.xlu0 %v444
      %v446 = vpop.xlane.xlu0 %445
      %vm447 = vcmask 277768
      %448 = vst.msk [vmem:[#allocation2] sm:$0xff] %vm447, %v417
      %449 = vst.msk [vmem:[#allocation2 + $0x8] sm:$0xff] %vm447, %v420
      %450 = vst.msk [vmem:[#allocation2 + $0x10] sm:$0xff] %vm447, %v423
      %451 = vst.msk [vmem:[#allocation2 + $0x18] sm:$0xff] %vm447, %v426
      %452 = vst.msk [vmem:[#allocation3] sm:$0xff] %vm447, %v437
      %453 = vst.msk [vmem:[#allocation3 + $0x8] sm:$0xff] %vm447, %v440
      %454 = vst.msk [vmem:[#allocation3 + $0x10] sm:$0xff] %vm447, %v443
      %455 = vst.msk [vmem:[#allocation3 + $0x18] sm:$0xff] %vm447, %v446
      %vm456 = vcmp.eq.f32.partialorder %v357, %v437
      %vm457 = vcmp.eq.f32.partialorder %v358, %v440
      %vm458 = vcmp.eq.f32.partialorder %v359, %v443
      %vm459 = vcmp.eq.f32.partialorder %v360, %v446
      %vm460 = vmand %vm427, %vm456
      %vm461 = vmand %vm428, %vm457
      %vm462 = vmand %vm429, %vm458
      %vm463 = vmand %vm430, %vm459
      %v464 = vsel %vm460, inf, %v411
      %v465 = vsel %vm461, inf, %v412
      %v466 = vsel %vm462, inf, %v413
      %v467 = vsel %vm463, inf, %v414
      %v468 = vsel %vm361, %v464, inf
      %469 = vmin.xlane.f32.xlu0 %v468
      %v470 = vpop.xlane.xlu0 %469
      %v471 = vsel %vm361, %v465, inf
      %472 = vmin.xlane.f32.xlu0 %v471
      %v473 = vpop.xlane.xlu0 %472
      %v474 = vsel %vm361, %v466, inf
      %475 = vmin.xlane.f32.xlu0 %v474
      %v476 = vpop.xlane.xlu0 %475
      %v477 = vsel %vm361, %v467, inf
      %478 = vmin.xlane.f32.xlu0 %v477
      %v479 = vpop.xlane.xlu0 %478
      %vm480 = vcmp.eq.f32.partialorder %v464, %v470
      %vm481 = vcmp.eq.f32.partialorder %v465, %v473
      %vm482 = vcmp.eq.f32.partialorder %v466, %v476
      %vm483 = vcmp.eq.f32.partialorder %v467, %v479
      %v484 = vsel %vm480, %v357, 3e+38
      %v485 = vsel %vm481, %v358, 3e+38
      %v486 = vsel %vm482, %v359, 3e+38
      %v487 = vsel %vm483, %v360, 3e+38
      %v488 = vsel %vm361, %v484, inf
      %489 = vmin.xlane.f32.xlu0 %v488
      %v490 = vpop.xlane.xlu0 %489
      %v491 = vsel %vm361, %v485, inf
      %492 = vmin.xlane.f32.xlu0 %v491
      %v493 = vpop.xlane.xlu0 %492
      %v494 = vsel %vm361, %v486, inf
      %495 = vmin.xlane.f32.xlu0 %v494
      %v496 = vpop.xlane.xlu0 %495
      %v497 = vsel %vm361, %v487, inf
      %498 = vmin.xlane.f32.xlu0 %v497
      %v499 = vpop.xlane.xlu0 %498
      %vm500 = vcmask 285968
      %501 = vst.msk [vmem:[#allocation2] sm:$0xff] %vm500, %v470
      %502 = vst.msk [vmem:[#allocation2 + $0x8] sm:$0xff] %vm500, %v473
      %503 = vst.msk [vmem:[#allocation2 + $0x10] sm:$0xff] %vm500, %v476
      %504 = vst.msk [vmem:[#allocation2 + $0x18] sm:$0xff] %vm500, %v479
      %505 = vst.msk [vmem:[#allocation3] sm:$0xff] %vm500, %v490
      %506 = vst.msk [vmem:[#allocation3 + $0x8] sm:$0xff] %vm500, %v493
      %507 = vst.msk [vmem:[#allocation3 + $0x10] sm:$0xff] %vm500, %v496
      %508 = vst.msk [vmem:[#allocation3 + $0x18] sm:$0xff] %vm500, %v499
      %vm509 = vcmp.eq.f32.partialorder %v357, %v490
      %vm510 = vcmp.eq.f32.partialorder %v358, %v493
      %vm511 = vcmp.eq.f32.partialorder %v359, %v496
      %vm512 = vcmp.eq.f32.partialorder %v360, %v499
      %vm513 = vmand %vm480, %vm509
      %vm514 = vmand %vm481, %vm510
      %vm515 = vmand %vm482, %vm511
      %vm516 = vmand %vm483, %vm512
      %v517 = vsel %vm513, inf, %v464
      %v518 = vsel %vm514, inf, %v465
      %v519 = vsel %vm515, inf, %v466
      %v520 = vsel %vm516, inf, %v467
      %v521 = vsel %vm361, %v517, inf
      %522 = vmin.xlane.f32.xlu0 %v521
      %v523 = vpop.xlane.xlu0 %522
      %v524 = vsel %vm361, %v518, inf
      %525 = vmin.xlane.f32.xlu0 %v524
      %v526 = vpop.xlane.xlu0 %525
      %v527 = vsel %vm361, %v519, inf
      %528 = vmin.xlane.f32.xlu0 %v527
      %v529 = vpop.xlane.xlu0 %528
      %v530 = vsel %vm361, %v520, inf
      %531 = vmin.xlane.f32.xlu0 %v530
      %v532 = vpop.xlane.xlu0 %531
      %vm533 = vcmp.eq.f32.partialorder %v517, %v523
      %vm534 = vcmp.eq.f32.partialorder %v518, %v526
      %vm535 = vcmp.eq.f32.partialorder %v519, %v529
      %vm536 = vcmp.eq.f32.partialorder %v520, %v532
      %v537 = vsel %vm533, %v357, 3e+38
      %v538 = vsel %vm534, %v358, 3e+38
      %v539 = vsel %vm535, %v359, 3e+38
      %v540 = vsel %vm536, %v360, 3e+38
      %v541 = vsel %vm361, %v537, inf
      %542 = vmin.xlane.f32.xlu0 %v541
      %v543 = vpop.xlane.xlu0 %542
      %v544 = vsel %vm361, %v538, inf
      %545 = vmin.xlane.f32.xlu0 %v544
      %v546 = vpop.xlane.xlu0 %545
      %v547 = vsel %vm361, %v539, inf
      %548 = vmin.xlane.f32.xlu0 %v547
      %v549 = vpop.xlane.xlu0 %548
      %v550 = vsel %vm361, %v540, inf
      %551 = vmin.xlane.f32.xlu0 %v550
      %v552 = vpop.xlane.xlu0 %551
      %vm553 = vcmask 294168
      %554 = vst.msk [vmem:[#allocation2] sm:$0xff] %vm553, %v523
      %555 = vst.msk [vmem:[#allocation2 + $0x8] sm:$0xff] %vm553, %v526
      %556 = vst.msk [vmem:[#allocation2 + $0x10] sm:$0xff] %vm553, %v529
      %557 = vst.msk [vmem:[#allocation2 + $0x18] sm:$0xff] %vm553, %v532
      %558 = vst.msk [vmem:[#allocation3] sm:$0xff] %vm553, %v543
      %559 = vst.msk [vmem:[#allocation3 + $0x8] sm:$0xff] %vm553, %v546
      %560 = vst.msk [vmem:[#allocation3 + $0x10] sm:$0xff] %vm553, %v549
      %561 = vst.msk [vmem:[#allocation3 + $0x18] sm:$0xff] %vm553, %v552
      %vm562 = vcmp.eq.f32.partialorder %v357, %v543
      %vm563 = vcmp.eq.f32.partialorder %v358, %v546
      %vm564 = vcmp.eq.f32.partialorder %v359, %v549
      %vm565 = vcmp.eq.f32.partialorder %v360, %v552
      %vm566 = vmand %vm533, %vm562
      %vm567 = vmand %vm534, %vm563
      %vm568 = vmand %vm535, %vm564
      %vm569 = vmand %vm536, %vm565
      %v570 = vsel %vm566, inf, %v517
      %v571 = vsel %vm567, inf, %v518
      %v572 = vsel %vm568, inf, %v519
      %v573 = vsel %vm569, inf, %v520
      %v574 = vsel %vm361, %v570, inf
      %575 = vmin.xlane.f32.xlu0 %v574
      %v576 = vpop.xlane.xlu0 %575
      %v577 = vsel %vm361, %v571, inf
      %578 = vmin.xlane.f32.xlu0 %v577
      %v579 = vpop.xlane.xlu0 %578
      %v580 = vsel %vm361, %v572, inf
      %581 = vmin.xlane.f32.xlu0 %v580
      %v582 = vpop.xlane.xlu0 %581
      %v583 = vsel %vm361, %v573, inf
      %584 = vmin.xlane.f32.xlu0 %v583
      %v585 = vpop.xlane.xlu0 %584
      %vm586 = vcmp.eq.f32.partialorder %v570, %v576
      %vm587 = vcmp.eq.f32.partialorder %v571, %v579
      %vm588 = vcmp.eq.f32.partialorder %v572, %v582
      %vm589 = vcmp.eq.f32.partialorder %v573, %v585
      %v590 = vsel %vm586, %v357, 3e+38
      %v591 = vsel %vm587, %v358, 3e+38
      %v592 = vsel %vm588, %v359, 3e+38
      %v593 = vsel %vm589, %v360, 3e+38
      %v594 = vsel %vm361, %v590, inf
      %595 = vmin.xlane.f32.xlu0 %v594
      %v596 = vpop.xlane.xlu0 %595
      %v597 = vsel %vm361, %v591, inf
      %598 = vmin.xlane.f32.xlu0 %v597
      %v599 = vpop.xlane.xlu0 %598
      %v600 = vsel %vm361, %v592, inf
      %601 = vmin.xlane.f32.xlu0 %v600
      %v602 = vpop.xlane.xlu0 %601
      %v603 = vsel %vm361, %v593, inf
      %604 = vmin.xlane.f32.xlu0 %v603
      %v605 = vpop.xlane.xlu0 %604
      %vm606 = vcmask 302368
      %607 = vst.msk [vmem:[#allocation2] sm:$0xff] %vm606, %v576
      %608 = vst.msk [vmem:[#allocation2 + $0x8] sm:$0xff] %vm606, %v579
      %609 = vst.msk [vmem:[#allocation2 + $0x10] sm:$0xff] %vm606, %v582
      %610 = vst.msk [vmem:[#allocation2 + $0x18] sm:$0xff] %vm606, %v585
      %611 = vst.msk [vmem:[#allocation3] sm:$0xff] %vm606, %v596
      %612 = vst.msk [vmem:[#allocation3 + $0x8] sm:$0xff] %vm606, %v599
      %613 = vst.msk [vmem:[#allocation3 + $0x10] sm:$0xff] %vm606, %v602
      %614 = vst.msk [vmem:[#allocation3 + $0x18] sm:$0xff] %vm606, %v605
      %vm615 = vcmp.eq.f32.partialorder %v357, %v596
      %vm616 = vcmp.eq.f32.partialorder %v358, %v599
      %vm617 = vcmp.eq.f32.partialorder %v359, %v602
      %vm618 = vcmp.eq.f32.partialorder %v360, %v605
      %vm619 = vmand %vm586, %vm615
      %vm620 = vmand %vm587, %vm616
      %vm621 = vmand %vm588, %vm617
      %vm622 = vmand %vm589, %vm618
      %v623 = vsel %vm619, inf, %v570
      %v624 = vsel %vm620, inf, %v571
      %v625 = vsel %vm621, inf, %v572
      %v626 = vsel %vm622, inf, %v573
      %v627 = vsel %vm361, %v623, inf
      %628 = vmin.xlane.f32.xlu0 %v627
      %v629 = vpop.xlane.xlu0 %628
      %v630 = vsel %vm361, %v624, inf
      %631 = vmin.xlane.f32.xlu0 %v630
      %v632 = vpop.xlane.xlu0 %631
      %v633 = vsel %vm361, %v625, inf
      %634 = vmin.xlane.f32.xlu0 %v633
      %v635 = vpop.xlane.xlu0 %634
      %v636 = vsel %vm361, %v626, inf
      %637 = vmin.xlane.f32.xlu0 %v636
      %v638 = vpop.xlane.xlu0 %637
      %vm639 = vcmp.eq.f32.partialorder %v623, %v629
      %vm640 = vcmp.eq.f32.partialorder %v624, %v632
      %vm641 = vcmp.eq.f32.partialorder %v625, %v635
      %vm642 = vcmp.eq.f32.partialorder %v626, %v638
      %v643 = vsel %vm639, %v357, 3e+38
      %v644 = vsel %vm640, %v358, 3e+38
      %v645 = vsel %vm641, %v359, 3e+38
      %v646 = vsel %vm642, %v360, 3e+38
      %v647 = vsel %vm361, %v643, inf
      %648 = vmin.xlane.f32.xlu0 %v647
      %v649 = vpop.xlane.xlu0 %648
      %v650 = vsel %vm361, %v644, inf
      %651 = vmin.xlane.f32.xlu0 %v650
      %v652 = vpop.xlane.xlu0 %651
      %v653 = vsel %vm361, %v645, inf
      %654 = vmin.xlane.f32.xlu0 %v653
      %v655 = vpop.xlane.xlu0 %654
      %v656 = vsel %vm361, %v646, inf
      %657 = vmin.xlane.f32.xlu0 %v656
      %v658 = vpop.xlane.xlu0 %657
      %vm659 = vcmask 310568
      %660 = vst.msk [vmem:[#allocation2] sm:$0xff] %vm659, %v629
      %661 = vst.msk [vmem:[#allocation2 + $0x8] sm:$0xff] %vm659, %v632
      %662 = vst.msk [vmem:[#allocation2 + $0x10] sm:$0xff] %vm659, %v635
      %663 = vst.msk [vmem:[#allocation2 + $0x18] sm:$0xff] %vm659, %v638
      %664 = vst.msk [vmem:[#allocation3] sm:$0xff] %vm659, %v649
      %665 = vst.msk [vmem:[#allocation3 + $0x8] sm:$0xff] %vm659, %v652
      %666 = vst.msk [vmem:[#allocation3 + $0x10] sm:$0xff] %vm659, %v655
      %667 = vst.msk [vmem:[#allocation3 + $0x18] sm:$0xff] %vm659, %v658
      %vm668 = vcmp.eq.f32.partialorder %v357, %v649
      %vm669 = vcmp.eq.f32.partialorder %v358, %v652
      %vm670 = vcmp.eq.f32.partialorder %v359, %v655
      %vm671 = vcmp.eq.f32.partialorder %v360, %v658
      %vm672 = vmand %vm639, %vm668
      %vm673 = vmand %vm640, %vm669
      %vm674 = vmand %vm641, %vm670
      %vm675 = vmand %vm642, %vm671
      %v676 = vsel %vm672, inf, %v623
      %v677 = vsel %vm673, inf, %v624
      %v678 = vsel %vm674, inf, %v625
      %v679 = vsel %vm675, inf, %v626
      %v680 = vsel %vm361, %v676, inf
      %681 = vmin.xlane.f32.xlu0 %v680
      %v682 = vpop.xlane.xlu0 %681
      %v683 = vsel %vm361, %v677, inf
      %684 = vmin.xlane.f32.xlu0 %v683
      %v685 = vpop.xlane.xlu0 %684
      %v686 = vsel %vm361, %v678, inf
      %687 = vmin.xlane.f32.xlu0 %v686
      %v688 = vpop.xlane.xlu0 %687
      %v689 = vsel %vm361, %v679, inf
      %690 = vmin.xlane.f32.xlu0 %v689
      %v691 = vpop.xlane.xlu0 %690
      %vm692 = vcmp.eq.f32.partialorder %v676, %v682
      %vm693 = vcmp.eq.f32.partialorder %v677, %v685
      %vm694 = vcmp.eq.f32.partialorder %v678, %v688
      %vm695 = vcmp.eq.f32.partialorder %v679, %v691
      %v696 = vsel %vm692, %v357, 3e+38
      %v697 = vsel %vm693, %v358, 3e+38
      %v698 = vsel %vm694, %v359, 3e+38
      %v699 = vsel %vm695, %v360, 3e+38
      %v700 = vsel %vm361, %v696, inf
      %701 = vmin.xlane.f32.xlu0 %v700
      %v702 = vpop.xlane.xlu0 %701
      %v703 = vsel %vm361, %v697, inf
      %704 = vmin.xlane.f32.xlu0 %v703
      %v705 = vpop.xlane.xlu0 %704
      %v706 = vsel %vm361, %v698, inf
      %707 = vmin.xlane.f32.xlu0 %v706
      %v708 = vpop.xlane.xlu0 %707
      %v709 = vsel %vm361, %v699, inf
      %710 = vmin.xlane.f32.xlu0 %v709
      %v711 = vpop.xlane.xlu0 %710
      %vm712 = vcmask 318768
      %713 = vst.msk [vmem:[#allocation2] sm:$0xff] %vm712, %v682
      %714 = vst.msk [vmem:[#allocation2 + $0x8] sm:$0xff] %vm712, %v685
      %715 = vst.msk [vmem:[#allocation2 + $0x10] sm:$0xff] %vm712, %v688
      %716 = vst.msk [vmem:[#allocation2 + $0x18] sm:$0xff] %vm712, %v691
      %717 = vst.msk [vmem:[#allocation3] sm:$0xff] %vm712, %v702
      %718 = vst.msk [vmem:[#allocation3 + $0x8] sm:$0xff] %vm712, %v705
      %719 = vst.msk [vmem:[#allocation3 + $0x10] sm:$0xff] %vm712, %v708
      %720 = vst.msk [vmem:[#allocation3 + $0x18] sm:$0xff] %vm712, %v711
      %vm721 = vcmp.eq.f32.partialorder %v357, %v702
      %vm722 = vcmp.eq.f32.partialorder %v358, %v705
      %vm723 = vcmp.eq.f32.partialorder %v359, %v708
      %vm724 = vcmp.eq.f32.partialorder %v360, %v711
      %vm725 = vmand %vm692, %vm721
      %vm726 = vmand %vm693, %vm722
      %vm727 = vmand %vm694, %vm723
      %vm728 = vmand %vm695, %vm724
      %v729 = vsel %vm725, inf, %v676
      %v730 = vsel %vm726, inf, %v677
      %v731 = vsel %vm727, inf, %v678
      %v732 = vsel %vm728, inf, %v679
      %v733 = vsel %vm361, %v729, inf
      %734 = vmin.xlane.f32.xlu0 %v733
      %v735 = vpop.xlane.xlu0 %734
      %v736 = vsel %vm361, %v730, inf
      %737 = vmin.xlane.f32.xlu0 %v736
      %v738 = vpop.xlane.xlu0 %737
      %v739 = vsel %vm361, %v731, inf
      %740 = vmin.xlane.f32.xlu0 %v739
      %v741 = vpop.xlane.xlu0 %740
      %v742 = vsel %vm361, %v732, inf
      %743 = vmin.xlane.f32.xlu0 %v742
      %v744 = vpop.xlane.xlu0 %743
      %vm745 = vcmp.eq.f32.partialorder %v729, %v735
      %vm746 = vcmp.eq.f32.partialorder %v730, %v738
      %vm747 = vcmp.eq.f32.partialorder %v731, %v741
      %vm748 = vcmp.eq.f32.partialorder %v732, %v744
      %v749 = vsel %vm745, %v357, 3e+38
      %v750 = vsel %vm746, %v358, 3e+38
      %v751 = vsel %vm747, %v359, 3e+38
      %v752 = vsel %vm748, %v360, 3e+38
      %v753 = vsel %vm361, %v749, inf
      %754 = vmin.xlane.f32.xlu0 %v753
      %v755 = vpop.xlane.xlu0 %754
      %v756 = vsel %vm361, %v750, inf
      %757 = vmin.xlane.f32.xlu0 %v756
      %v758 = vpop.xlane.xlu0 %757
      %v759 = vsel %vm361, %v751, inf
      %760 = vmin.xlane.f32.xlu0 %v759
      %v761 = vpop.xlane.xlu0 %760
      %v762 = vsel %vm361, %v752, inf
      %763 = vmin.xlane.f32.xlu0 %v762
      %v764 = vpop.xlane.xlu0 %763
      %vm765 = vcmask 326968
      %766 = vst.msk [vmem:[#allocation2] sm:$0xff] %vm765, %v735
      %767 = vst.msk [vmem:[#allocation2 + $0x8] sm:$0xff] %vm765, %v738
      %768 = vst.msk [vmem:[#allocation2 + $0x10] sm:$0xff] %vm765, %v741
      %769 = vst.msk [vmem:[#allocation2 + $0x18] sm:$0xff] %vm765, %v744
      %770 = vst.msk [vmem:[#allocation3] sm:$0xff] %vm765, %v755
      %771 = vst.msk [vmem:[#allocation3 + $0x8] sm:$0xff] %vm765, %v758
      %772 = vst.msk [vmem:[#allocation3 + $0x10] sm:$0xff] %vm765, %v761
      %773 = vst.msk [vmem:[#allocation3 + $0x18] sm:$0xff] %vm765, %v764
      %p774 = scmp.eq.s32.totalorder %s18, 1
      // Predicated region
      $region33: #{tpu_custom_call.1} parent=27 // pred_check
        %p775 = pneg %p774
      $region34: #{tpu_custom_call.1} parent=27 // pred_check_branch
        %777 = sbr.rel (%p775) target = $region36
      $region35: #{tpu_custom_call.1} parent=27 // pred_region
        %v778 = vld [vmem:[#allocation3] sm:$0xff]
        %v779 = vld [vmem:[#allocation3 + $0x8] sm:$0xff]
        %v780 = vld [vmem:[#allocation3 + $0x10] sm:$0xff]
        %v781 = vld [vmem:[#allocation3 + $0x18] sm:$0xff]
        %v782 = vcvt.f32.s32.to.zero.pseudo %v778
        %v783 = vcvt.f32.s32.to.zero.pseudo %v779
        %v784 = vcvt.f32.s32.to.zero.pseudo %v780
        %v785 = vcvt.f32.s32.to.zero.pseudo %v781
        %786 = vrot.lane.b32.xlu0 %v782, 96
        %v787 = vpop.permute.xlu0 %786
        %788 = vrot.lane.b32.xlu0 %v783, 96
        %v789 = vpop.permute.xlu0 %788
        %790 = vrot.lane.b32.xlu0 %v784, 96
        %v791 = vpop.permute.xlu0 %790
        %792 = vrot.lane.b32.xlu0 %v785, 96
        %v793 = vpop.permute.xlu0 %792
        %794 = vst.msk [vmem:[%s179] sm:$0xff] %vm202, %v787
        %795 = vst.msk [vmem:[%s179 + $0x8] sm:$0xff] %vm202, %v789
        %796 = vst.msk [vmem:[%s179 + $0x10] sm:$0xff] %vm202, %v791
        %797 = vst.msk [vmem:[%s179 + $0x18] sm:$0xff] %vm202, %v793
      $region36: #{tpu_custom_call.1} parent=27 // pred_fallthru
        _
      %s798 = smul.u32 4, %s17
      %p799 = scmp.lt.s32.totalorder %s798, 7
      %s800 = scalar_select %p799, %s798, 7
      %s801 = smul.addr %s800, 8
      %s802 = scalar_lea.vmem %s2, %s801
      // Predicated region
      $region37: #{tpu_custom_call.1} parent=27 // pred_check
        %p803 = pneg %p95
      $region38: #{tpu_custom_call.1} parent=27 // pred_check_branch
        %805 = sbr.rel (%p803) target = $region40
      $region39: #{tpu_custom_call.1} parent=27 // pred_region
        %s806 = smul.u32 4, %s17
      $region40: #{tpu_custom_call.1} parent=27 // pred_fallthru
        _
    $region28: #{tpu_custom_call.1} parent=5 // pred_fallthru
      _
    %p807 = scmp.le.s32.totalorder 2, %s8
    // Predicated region
    $region41: #{tpu_custom_call.1} parent=5 // pred_check
      %p808 = pneg %p807
    $region42: #{tpu_custom_call.1} parent=5 // pred_check_branch
      %810 = sbr.rel (%p808) target = $region44
    $region43: #{tpu_custom_call.1} parent=5 // pred_region
      %s811 = ssub.s32 %s8, 2
      // Predicated region
      $region45: #{tpu_custom_call.1} parent=43 // pred_check
        %p812 = pneg %p101
      $region46: #{tpu_custom_call.1} parent=43 // pred_check_branch
        %814 = sbr.rel (%p812) target = $region48
      $region47: #{tpu_custom_call.1} parent=43 // pred_region
        %s815 = smul.u32 4, %s19
        %p816 = scmp.lt.s32.totalorder %s815, 7
        %s817 = scalar_select %p816, %s815, 7
        %s818 = smul.addr %s817, 8
        %s819 = scalar_lea.vmem %s2, %s818
      $region48: #{tpu_custom_call.1} parent=43 // pred_fallthru
        _
    $region44: #{tpu_custom_call.1} parent=5 // pred_fallthru
      _
  $region6: #{tpu_custom_call.1} parent=0 // loop_footer
    %s12 = sadd.s32 1, %s8
  $region7: #{tpu_custom_call.1} parent=0 // loop_footer_branch
    %7 = sbr.rel target = $region3
  $region8: #{tpu_custom_call.1} parent=0 // loop_exit
    _

</llo_original>
